<compile_context>
chip_gen: v7x
topology: tpu7x:2x2x1
jax: 0.10.0
libtpu: 0.0.40
codegen_flags: <defaults>
</compile_context>

<pallas_src>
import functools

import jax
import jax.numpy as jnp
from jax import lax
from jax.experimental import pallas as pl
from jax.experimental.pallas import tpu as pltpu


def _boundary_dou_kernel(logits_ref, labels_ref, out_ref,
                         sz_acc, in_acc, it_acc, zs_acc,
                         *, width, n_classes):
    """One batch image per grid step; per-class partials accumulated in VMEM.

    logits_ref: (C, HW) f32   class-major logits of one image (HW = H*W)
    labels_ref: (1, HW) i8    class labels per pixel of one image
    out_ref:    (1,)    f32   SMEM scalar output (mean loss over classes)
    sz_acc/in_acc/it_acc/zs_acc: (C, 1) f32 VMEM accumulators
    """
    C = n_classes
    HW = logits_ref.shape[-1]
    W = width

    b = pl.program_id(0)
    nb = pl.num_programs(0)

    @pl.when(b == 0)
    def _init():
        sz_acc[...] = jnp.zeros_like(sz_acc)
        in_acc[...] = jnp.zeros_like(in_acc)
        it_acc[...] = jnp.zeros_like(it_acc)
        zs_acc[...] = jnp.zeros_like(zs_acc)

    x = logits_ref[...]                                   # (C, HW) f32
    lab = labels_ref[...].astype(jnp.int32)               # (1, HW) i32

    # --- softmax over classes (sublane axis); one divide per pixel ----------
    m = jnp.max(x, axis=0, keepdims=True)                 # (1, HW)
    e = jnp.exp(x - m)                                    # (C, HW)
    inv = 1.0 / jnp.sum(e, axis=0, keepdims=True)         # (1, HW) exact
    probs = e * inv                                       # (C, HW)

    # --- one-hot targets for every class at once -----------------------------
    cls = lax.broadcasted_iota(jnp.int32, (C, HW), 0)     # (C, HW)
    t = (lab == cls).astype(jnp.float32)                  # (C, HW) in {0,1}

    # --- in-kernel boundary masks (no side-input streams) --------------------
    pos = lax.broadcasted_iota(jnp.int32, (1, HW), 1)     # flat index in image
    if (W & (W - 1)) == 0:
        col = pos & (W - 1)                               # power-of-two fast path
    else:
        col = lax.rem(pos, W)
    m_left = col > 0
    m_right = col < (W - 1)
    m_up = pos >= W
    m_down = pos < (HW - W)

    # --- 3x3 cross-kernel stencil as masked lane rolls (XLU), folded in place.
    # interior pixel <=> t==1 and all 4 cross-neighbours ==1 (conv zero-padding
    # makes image-edge pixels non-interior automatically via the masks).
    inter = t
    inter = inter * jnp.where(m_left, pltpu.roll(t, shift=1, axis=1), 0.0)       # t[h, w-1]
    inter = inter * jnp.where(m_right, pltpu.roll(t, shift=HW - 1, axis=1), 0.0)  # t[h, w+1]
    inter = inter * jnp.where(m_up, pltpu.roll(t, shift=W, axis=1), 0.0)          # t[h-1, w]
    inter = inter * jnp.where(m_down, pltpu.roll(t, shift=HW - W, axis=1), 0.0)   # t[h+1, w]

    # --- per-class partial reductions over this image, accumulated in scratch.
    sz_acc[...] += jnp.sum(t, axis=1, keepdims=True)              # S (== y_sum)
    in_acc[...] += jnp.sum(inter, axis=1, keepdims=True)          # interior count
    it_acc[...] += jnp.sum(probs * t, axis=1, keepdims=True)      # intersect
    zs_acc[...] += jnp.sum(probs * probs, axis=1, keepdims=True)  # z_sum

    # --- finalize on the last grid step: boundary = size - interior ----------
    @pl.when(b == nb - 1)
    def _finalize():
        smooth = 1e-5
        size = sz_acc[...]                                # (C, 1)
        boundary = size - in_acc[...]                     # == count_nonzero(Y)
        intersect = it_acc[...]
        z_sum = zs_acc[...]
        y_sum = size                                      # t*t == t for 0/1

        alpha = 1.0 - (boundary + smooth) / (size + smooth)
        alpha = jnp.minimum(2.0 * alpha - 1.0, 0.8)

        loss_c = (z_sum + y_sum - 2.0 * intersect + smooth) / (
            z_sum + y_sum - (1.0 + alpha) * intersect + smooth)  # (C, 1)

        out_ref[0] = jnp.sum(loss_c) / C


@functools.partial(jax.jit, static_argnames=("n_classes",))
def boundary_dou_loss(logits, target, n_classes):
    """logits: (B, n_classes, H, W) f32; target: (B, 1, H, W) integer labels."""
    B, C, H, W = logits.shape
    assert C == n_classes
    HW = H * W

    # Free, copy-less views of the row-major layout (no HBM transpose pass).
    logits3d = logits.reshape(B, C, HW).astype(jnp.float32)       # (B, C, HW)
    labels3d = target.reshape(B, 1, HW).astype(jnp.int8)          # (B, 1, HW)

    kernel = functools.partial(_boundary_dou_kernel, width=W, n_classes=n_classes)

    out = pl.pallas_call(
        kernel,
        out_shape=jax.ShapeDtypeStruct((1,), jnp.float32),
        grid_spec=pltpu.PrefetchScalarGridSpec(
            num_scalar_prefetch=0,
            grid=(B,),
            in_specs=[
                # One image per step; squeezed batch dim, lane-dense (C, HW) block.
                pl.BlockSpec((pl.Squeezed(), C, HW), lambda b: (b, 0, 0)),
                pl.BlockSpec((pl.Squeezed(), 1, HW), lambda b: (b, 0, 0)),
            ],
            out_specs=pl.BlockSpec(memory_space=pltpu.SMEM),
            scratch_shapes=[pltpu.VMEM((n_classes, 1), jnp.float32)] * 4,
        ),
        compiler_params=pltpu.CompilerParams(
            dimension_semantics=("arbitrary",),   # batch axis is an accumulation axis
            vmem_limit_bytes=48 * 1024 * 1024,
        ),
    )(logits3d, labels3d)

    return out[0]


def _reference_loss(logits, target, n_classes):
    """Pure-JAX reference mirroring the PyTorch module."""
    labels = jnp.squeeze(target, axis=1)
    probs = jax.nn.softmax(logits, axis=1)
    onehot = (labels[:, None, :, :] ==
              jnp.arange(n_classes)[None, :, None, None]).astype(jnp.float32)
    smooth = 1e-5
    total = 0.0
    for i in range(n_classes):
        score = probs[:, i]
        t = onehot[:, i]
        tp = jnp.pad(t, ((0, 0), (1, 1), (1, 1)))
        Y = (tp[:, 1:-1, 1:-1] + tp[:, :-2, 1:-1] + tp[:, 2:, 1:-1]
             + tp[:, 1:-1, :-2] + tp[:, 1:-1, 2:])
        Y = Y * t
        Y = jnp.where(Y == 5.0, 0.0, Y)
        Cc = jnp.sum((Y != 0).astype(jnp.float32))
        S = jnp.sum((t != 0).astype(jnp.float32))
        alpha = 1.0 - (Cc + smooth) / (S + smooth)
        alpha = jnp.minimum(2.0 * alpha - 1.0, 0.8)
        inter = jnp.sum(score * t)
        y_sum = jnp.sum(t * t)
        z_sum = jnp.sum(score * score)
        total += (z_sum + y_sum - 2.0 * inter + smooth) / (
            z_sum + y_sum - (1.0 + alpha) * inter + smooth)
    return total / n_classes


if __name__ == "__main__":
    B, n_classes, H, W = 2, 4, 16, 16
    key = jax.random.PRNGKey(0)
    k1, k2 = jax.random.split(key)
    logits = jax.random.normal(k1, (B, n_classes, H, W), dtype=jnp.float32)
    target = jax.random.randint(k2, (B, 1, H, W), 0, n_classes, dtype=jnp.int32)

    loss = boundary_dou_loss(logits, target, n_classes)
    loss = jax.block_until_ready(loss)

    ref = jax.block_until_ready(_reference_loss(logits, target, n_classes))
    assert jnp.allclose(loss, ref, rtol=1e-5, atol=1e-5), (loss, ref)

    print("KERNEL_OK")
</pallas_src>

<mosaic_0001>
module attributes {stable_mosaic.version = 11 : i64} {
  func.func @_boundary_dou_kernel(%arg0: i32, %arg1: memref<1x4x256xf32, #tpu.memory_space<vmem>>, %arg2: memref<1x1x256xi8, #tpu.memory_space<vmem>>, %arg3: memref<1xf32, #tpu.memory_space<smem>>, %arg4: memref<4x1xf32, #tpu.memory_space<vmem>>, %arg5: memref<4x1xf32, #tpu.memory_space<vmem>>, %arg6: memref<4x1xf32, #tpu.memory_space<vmem>>, %arg7: memref<4x1xf32, #tpu.memory_space<vmem>>) attributes {dimension_semantics = [#tpu.dimension_semantics<arbitrary>], iteration_bounds = array<i64: 2>, scalar_prefetch = 0 : i64, scratch_operands = 4 : i64, tpu.core_type = #tpu.core_type<tc>, window_params = [{transform_indices = @transform_0, window_bounds = array<i64: 1, 4, 256>}, {transform_indices = @transform_1, window_bounds = array<i64: 1, 1, 256>}, {transform_indices = @transform_2, window_bounds = array<i64: 1>}]} {
    %c0_i32 = arith.constant 0 : i32
    %0 = arith.cmpi eq, %arg0, %c0_i32 : i32
    %1 = arith.extui %0 : i1 to i32
    %c0_i32_0 = arith.constant 0 : i32
    %2 = arith.cmpi ne, %1, %c0_i32_0 : i32
    scf.if %2 {
      %cst_38 = arith.constant 0.000000e+00 : f32
      %84 = vector.broadcast %cst_38 : f32 to vector<4x1xf32>
      %c0_39 = arith.constant 0 : index
      %c0_40 = arith.constant 0 : index
      %85 = vector.load %arg4[%c0_39, %c0_40] : memref<4x1xf32, #tpu.memory_space<vmem>>, vector<4x1xf32>
      tpu.vector_store %arg4[%c0_39, %c0_40], %84 {strides = array<i32>} : memref<4x1xf32, #tpu.memory_space<vmem>>, vector<4x1xf32>,
      %cst_41 = arith.constant 0.000000e+00 : f32
      %86 = vector.broadcast %cst_41 : f32 to vector<4x1xf32>
      %c0_42 = arith.constant 0 : index
      %c0_43 = arith.constant 0 : index
      %87 = vector.load %arg5[%c0_42, %c0_43] : memref<4x1xf32, #tpu.memory_space<vmem>>, vector<4x1xf32>
      tpu.vector_store %arg5[%c0_42, %c0_43], %86 {strides = array<i32>} : memref<4x1xf32, #tpu.memory_space<vmem>>, vector<4x1xf32>,
      %cst_44 = arith.constant 0.000000e+00 : f32
      %88 = vector.broadcast %cst_44 : f32 to vector<4x1xf32>
      %c0_45 = arith.constant 0 : index
      %c0_46 = arith.constant 0 : index
      %89 = vector.load %arg6[%c0_45, %c0_46] : memref<4x1xf32, #tpu.memory_space<vmem>>, vector<4x1xf32>
      tpu.vector_store %arg6[%c0_45, %c0_46], %88 {strides = array<i32>} : memref<4x1xf32, #tpu.memory_space<vmem>>, vector<4x1xf32>,
      %cst_47 = arith.constant 0.000000e+00 : f32
      %90 = vector.broadcast %cst_47 : f32 to vector<4x1xf32>
      %c0_48 = arith.constant 0 : index
      %c0_49 = arith.constant 0 : index
      %91 = vector.load %arg7[%c0_48, %c0_49] : memref<4x1xf32, #tpu.memory_space<vmem>>, vector<4x1xf32>
      tpu.vector_store %arg7[%c0_48, %c0_49], %90 {strides = array<i32>} : memref<4x1xf32, #tpu.memory_space<vmem>>, vector<4x1xf32>,
    } else {
    }
    %c0 = arith.constant 0 : index
    %c0_1 = arith.constant 0 : index
    %c0_2 = arith.constant 0 : index
    %3 = vector.load %arg1[%c0, %c0_1, %c0_2] : memref<1x4x256xf32, #tpu.memory_space<vmem>>, vector<1x4x256xf32>
    %4 = vector.shape_cast %3 : vector<1x4x256xf32> to vector<4x256xf32>
    %c0_3 = arith.constant 0 : index
    %c0_4 = arith.constant 0 : index
    %c0_5 = arith.constant 0 : index
    %5 = vector.load %arg2[%c0_3, %c0_4, %c0_5] : memref<1x1x256xi8, #tpu.memory_space<vmem>>, vector<1x1x256xi8>
    %6 = vector.shape_cast %5 : vector<1x1x256xi8> to vector<1x256xi8>
    %7 = arith.extsi %6 : vector<1x256xi8> to vector<1x256xi32>
    %cst = arith.constant dense<0xFF800000> : vector<256xf32>
    %8 = vector.multi_reduction <maximumf>, %4, %cst [0] : vector<4x256xf32> to vector<256xf32>
    %9 = vector.shape_cast %8 : vector<256xf32> to vector<1x256xf32>
    %10 = vector.broadcast %9 : vector<1x256xf32> to vector<4x256xf32>
    %11 = arith.subf %4, %10 : vector<4x256xf32>
    %12 = math.exp %11 : vector<4x256xf32>
    %cst_6 = arith.constant dense<0.000000e+00> : vector<256xf32>
    %13 = vector.multi_reduction <add>, %12, %cst_6 [0] : vector<4x256xf32> to vector<256xf32>
    %14 = vector.shape_cast %13 : vector<256xf32> to vector<1x256xf32>
    %cst_7 = arith.constant 1.000000e+00 : f32
    %15 = vector.broadcast %cst_7 : f32 to vector<1x256xf32>
    %16 = arith.divf %15, %14 : vector<1x256xf32>
    %17 = vector.broadcast %16 : vector<1x256xf32> to vector<4x256xf32>
    %18 = arith.mulf %12, %17 : vector<4x256xf32>
    %19 = tpu.iota {dimensions = array<i32: 0>} : vector<4x256xi32>
    %20 = vector.broadcast %7 : vector<1x256xi32> to vector<4x256xi32>
    %21 = arith.cmpi eq, %20, %19 : vector<4x256xi32>
    %22 = arith.extui %21 : vector<4x256xi1> to vector<4x256xi32>
    %23 = arith.sitofp %22 : vector<4x256xi32> to vector<4x256xf32>
    %24 = tpu.iota {dimensions = array<i32: 1>} : vector<1x256xi32>
    %c15_i32 = arith.constant 15 : i32
    %25 = vector.broadcast %c15_i32 : i32 to vector<1x256xi32>
    %26 = arith.andi %24, %25 : vector<1x256xi32>
    %c0_i32_8 = arith.constant 0 : i32
    %27 = vector.broadcast %c0_i32_8 : i32 to vector<1x256xi32>
    %28 = arith.cmpi sgt, %26, %27 : vector<1x256xi32>
    %c15_i32_9 = arith.constant 15 : i32
    %29 = vector.broadcast %c15_i32_9 : i32 to vector<1x256xi32>
    %30 = arith.cmpi slt, %26, %29 : vector<1x256xi32>
    %c16_i32 = arith.constant 16 : i32
    %31 = vector.broadcast %c16_i32 : i32 to vector<1x256xi32>
    %32 = arith.cmpi sge, %24, %31 : vector<1x256xi32>
    %c240_i32 = arith.constant 240 : i32
    %33 = vector.broadcast %c240_i32 : i32 to vector<1x256xi32>
    %34 = arith.cmpi slt, %24, %33 : vector<1x256xi32>
    %c1_i32 = arith.constant 1 : i32
    %35 = tpu.dynamic_rotate %23 by %c1_i32 dim 1 : vector<4x256xf32>, i32 -> vector<4x256xf32>
    %cst_10 = arith.constant 0.000000e+00 : f32
    %36 = vector.shape_cast %28 : vector<1x256xi1> to vector<1x256xi1>
    %37 = vector.broadcast %36 : vector<1x256xi1> to vector<4x256xi1>
    %38 = vector.broadcast %cst_10 : f32 to vector<4x256xf32>
    %39 = arith.select %37, %35, %38 : vector<4x256xi1>, vector<4x256xf32>
    %40 = arith.mulf %23, %39 : vector<4x256xf32>
    %c255_i32 = arith.constant 255 : i32
    %41 = tpu.dynamic_rotate %23 by %c255_i32 dim 1 : vector<4x256xf32>, i32 -> vector<4x256xf32>
    %cst_11 = arith.constant 0.000000e+00 : f32
    %42 = vector.shape_cast %30 : vector<1x256xi1> to vector<1x256xi1>
    %43 = vector.broadcast %42 : vector<1x256xi1> to vector<4x256xi1>
    %44 = vector.broadcast %cst_11 : f32 to vector<4x256xf32>
    %45 = arith.select %43, %41, %44 : vector<4x256xi1>, vector<4x256xf32>
    %46 = arith.mulf %40, %45 : vector<4x256xf32>
    %c16_i32_12 = arith.constant 16 : i32
    %47 = tpu.dynamic_rotate %23 by %c16_i32_12 dim 1 : vector<4x256xf32>, i32 -> vector<4x256xf32>
    %cst_13 = arith.constant 0.000000e+00 : f32
    %48 = vector.shape_cast %32 : vector<1x256xi1> to vector<1x256xi1>
    %49 = vector.broadcast %48 : vector<1x256xi1> to vector<4x256xi1>
    %50 = vector.broadcast %cst_13 : f32 to vector<4x256xf32>
    %51 = arith.select %49, %47, %50 : vector<4x256xi1>, vector<4x256xf32>
    %52 = arith.mulf %46, %51 : vector<4x256xf32>
    %c240_i32_14 = arith.constant 240 : i32
    %53 = tpu.dynamic_rotate %23 by %c240_i32_14 dim 1 : vector<4x256xf32>, i32 -> vector<4x256xf32>
    %cst_15 = arith.constant 0.000000e+00 : f32
    %54 = vector.shape_cast %34 : vector<1x256xi1> to vector<1x256xi1>
    %55 = vector.broadcast %54 : vector<1x256xi1> to vector<4x256xi1>
    %56 = vector.broadcast %cst_15 : f32 to vector<4x256xf32>
    %57 = arith.select %55, %53, %56 : vector<4x256xi1>, vector<4x256xf32>
    %58 = arith.mulf %52, %57 : vector<4x256xf32>
    %c0_16 = arith.constant 0 : index
    %c0_17 = arith.constant 0 : index
    %59 = vector.load %arg4[%c0_16, %c0_17] : memref<4x1xf32, #tpu.memory_space<vmem>>, vector<4x1xf32>
    %cst_18 = arith.constant dense<0.000000e+00> : vector<4xf32>
    %60 = vector.multi_reduction <add>, %23, %cst_18 [1] : vector<4x256xf32> to vector<4xf32>
    %61 = vector.shape_cast %60 : vector<4xf32> to vector<4x1xf32>
    %62 = arith.addf %59, %61 : vector<4x1xf32>
    %c0_19 = arith.constant 0 : index
    %c0_20 = arith.constant 0 : index
    %63 = vector.load %arg4[%c0_19, %c0_20] : memref<4x1xf32, #tpu.memory_space<vmem>>, vector<4x1xf32>
    tpu.vector_store %arg4[%c0_19, %c0_20], %62 {strides = array<i32>} : memref<4x1xf32, #tpu.memory_space<vmem>>, vector<4x1xf32>,
    %c0_21 = arith.constant 0 : index
    %c0_22 = arith.constant 0 : index
    %64 = vector.load %arg5[%c0_21, %c0_22] : memref<4x1xf32, #tpu.memory_space<vmem>>, vector<4x1xf32>
    %cst_23 = arith.constant dense<0.000000e+00> : vector<4xf32>
    %65 = vector.multi_reduction <add>, %58, %cst_23 [1] : vector<4x256xf32> to vector<4xf32>
    %66 = vector.shape_cast %65 : vector<4xf32> to vector<4x1xf32>
    %67 = arith.addf %64, %66 : vector<4x1xf32>
    %c0_24 = arith.constant 0 : index
    %c0_25 = arith.constant 0 : index
    %68 = vector.load %arg5[%c0_24, %c0_25] : memref<4x1xf32, #tpu.memory_space<vmem>>, vector<4x1xf32>
    tpu.vector_store %arg5[%c0_24, %c0_25], %67 {strides = array<i32>} : memref<4x1xf32, #tpu.memory_space<vmem>>, vector<4x1xf32>,
    %c0_26 = arith.constant 0 : index
    %c0_27 = arith.constant 0 : index
    %69 = vector.load %arg6[%c0_26, %c0_27] : memref<4x1xf32, #tpu.memory_space<vmem>>, vector<4x1xf32>
    %70 = arith.mulf %18, %23 : vector<4x256xf32>
    %cst_28 = arith.constant dense<0.000000e+00> : vector<4xf32>
    %71 = vector.multi_reduction <add>, %70, %cst_28 [1] : vector<4x256xf32> to vector<4xf32>
    %72 = vector.shape_cast %71 : vector<4xf32> to vector<4x1xf32>
    %73 = arith.addf %69, %72 : vector<4x1xf32>
    %c0_29 = arith.constant 0 : index
    %c0_30 = arith.constant 0 : index
    %74 = vector.load %arg6[%c0_29, %c0_30] : memref<4x1xf32, #tpu.memory_space<vmem>>, vector<4x1xf32>
    tpu.vector_store %arg6[%c0_29, %c0_30], %73 {strides = array<i32>} : memref<4x1xf32, #tpu.memory_space<vmem>>, vector<4x1xf32>,
    %c0_31 = arith.constant 0 : index
    %c0_32 = arith.constant 0 : index
    %75 = vector.load %arg7[%c0_31, %c0_32] : memref<4x1xf32, #tpu.memory_space<vmem>>, vector<4x1xf32>
    %76 = arith.mulf %18, %18 : vector<4x256xf32>
    %cst_33 = arith.constant dense<0.000000e+00> : vector<4xf32>
    %77 = vector.multi_reduction <add>, %76, %cst_33 [1] : vector<4x256xf32> to vector<4xf32>
    %78 = vector.shape_cast %77 : vector<4xf32> to vector<4x1xf32>
    %79 = arith.addf %75, %78 : vector<4x1xf32>
    %c0_34 = arith.constant 0 : index
    %c0_35 = arith.constant 0 : index
    %80 = vector.load %arg7[%c0_34, %c0_35] : memref<4x1xf32, #tpu.memory_space<vmem>>, vector<4x1xf32>
    tpu.vector_store %arg7[%c0_34, %c0_35], %79 {strides = array<i32>} : memref<4x1xf32, #tpu.memory_space<vmem>>, vector<4x1xf32>,
    %c1_i32_36 = arith.constant 1 : i32
    %81 = arith.cmpi eq, %arg0, %c1_i32_36 : i32
    %82 = arith.extui %81 : i1 to i32
    %c0_i32_37 = arith.constant 0 : i32
    %83 = arith.cmpi ne, %82, %c0_i32_37 : i32
    scf.if %83 {
      %c0_38 = arith.constant 0 : index
      %c0_39 = arith.constant 0 : index
      %84 = vector.load %arg4[%c0_38, %c0_39] : memref<4x1xf32, #tpu.memory_space<vmem>>, vector<4x1xf32>
      %c0_40 = arith.constant 0 : index
      %c0_41 = arith.constant 0 : index
      %85 = vector.load %arg5[%c0_40, %c0_41] : memref<4x1xf32, #tpu.memory_space<vmem>>, vector<4x1xf32>
      %86 = arith.subf %84, %85 : vector<4x1xf32>
      %c0_42 = arith.constant 0 : index
      %c0_43 = arith.constant 0 : index
      %87 = vector.load %arg6[%c0_42, %c0_43] : memref<4x1xf32, #tpu.memory_space<vmem>>, vector<4x1xf32>
      %c0_44 = arith.constant 0 : index
      %c0_45 = arith.constant 0 : index
      %88 = vector.load %arg7[%c0_44, %c0_45] : memref<4x1xf32, #tpu.memory_space<vmem>>, vector<4x1xf32>
      %cst_46 = arith.constant 9.99999974E-6 : f32
      %89 = vector.broadcast %cst_46 : f32 to vector<4x1xf32>
      %90 = arith.addf %86, %89 : vector<4x1xf32>
      %cst_47 = arith.constant 9.99999974E-6 : f32
      %91 = vector.broadcast %cst_47 : f32 to vector<4x1xf32>
      %92 = arith.addf %84, %91 : vector<4x1xf32>
      %93 = arith.divf %90, %92 : vector<4x1xf32>
      %cst_48 = arith.constant 1.000000e+00 : f32
      %94 = vector.broadcast %cst_48 : f32 to vector<4x1xf32>
      %95 = arith.subf %94, %93 : vector<4x1xf32>
      %cst_49 = arith.constant 2.000000e+00 : f32
      %96 = vector.broadcast %cst_49 : f32 to vector<4x1xf32>
      %97 = arith.mulf %96, %95 : vector<4x1xf32>
      %cst_50 = arith.constant 1.000000e+00 : f32
      %98 = vector.broadcast %cst_50 : f32 to vector<4x1xf32>
      %99 = arith.subf %97, %98 : vector<4x1xf32>
      %cst_51 = arith.constant 8.000000e-01 : f32
      %100 = vector.broadcast %cst_51 : f32 to vector<4x1xf32>
      %101 = arith.minimumf %99, %100 : vector<4x1xf32>
      %102 = arith.addf %88, %84 : vector<4x1xf32>
      %cst_52 = arith.constant 2.000000e+00 : f32
      %103 = vector.broadcast %cst_52 : f32 to vector<4x1xf32>
      %104 = arith.mulf %103, %87 : vector<4x1xf32>
      %105 = arith.subf %102, %104 : vector<4x1xf32>
      %cst_53 = arith.constant 9.99999974E-6 : f32
      %106 = vector.broadcast %cst_53 : f32 to vector<4x1xf32>
      %107 = arith.addf %105, %106 : vector<4x1xf32>
      %108 = arith.addf %88, %84 : vector<4x1xf32>
      %cst_54 = arith.constant 1.000000e+00 : f32
      %109 = vector.broadcast %cst_54 : f32 to vector<4x1xf32>
      %110 = arith.addf %109, %101 : vector<4x1xf32>
      %111 = arith.mulf %110, %87 : vector<4x1xf32>
      %112 = arith.subf %108, %111 : vector<4x1xf32>
      %cst_55 = arith.constant 9.99999974E-6 : f32
      %113 = vector.broadcast %cst_55 : f32 to vector<4x1xf32>
      %114 = arith.addf %112, %113 : vector<4x1xf32>
      %115 = arith.divf %107, %114 : vector<4x1xf32>
      %116 = vector.shape_cast %115 : vector<4x1xf32> to vector<1x4x1xf32>
      %cst_56 = arith.constant dense<0.000000e+00> : vector<1xf32>
      %117 = vector.multi_reduction <add>, %116, %cst_56 [1, 2] : vector<1x4x1xf32> to vector<1xf32>
      %118 = vector.shape_cast %117 : vector<1xf32> to vector<1x1x1xf32>
      %119 = vector.extract %118[0, 0, 0] : f32 from vector<1x1x1xf32>
      %cst_57 = arith.constant 4.000000e+00 : f32
      %120 = arith.divf %119, %cst_57 : f32
      %c0_58 = arith.constant 0 : index
      %121 = memref.load %arg3[%c0_58] : memref<1xf32, #tpu.memory_space<smem>>
      memref.store %120, %arg3[%c0_58] : memref<1xf32, #tpu.memory_space<smem>>
    } else {
    }
    return
  }
  func.func @transform_0(%arg0: i32) -> (i32, i32, i32) {
    %c0_i32 = arith.constant 0 : i32
    %c0_i32_0 = arith.constant 0 : i32
    %c0_i32_1 = arith.constant 0 : i32
    return %arg0, %c0_i32, %c0_i32_0 : i32, i32, i32
  }
  func.func @transform_1(%arg0: i32) -> (i32, i32, i32) {
    %c0_i32 = arith.constant 0 : i32
    %c0_i32_0 = arith.constant 0 : i32
    %c0_i32_1 = arith.constant 0 : i32
    return %arg0, %c0_i32, %c0_i32_0 : i32, i32, i32
  }
  func.func @transform_2(%arg0: i32) -> i32 {
    %c0_i32 = arith.constant 0 : i32
    %c0_i32_0 = arith.constant 0 : i32
    return %c0_i32 : i32
  }
}

</mosaic_0001>

<llo_original>
// kernel: boundary_dou_loss.1
$region0: #{boundary_dou_loss.1}
  #allocation0 [shape = 'u32[]', space=smem, size = 0x4, offset = 0x4, fixed_abs, tag = 'smem constant byte address 0x4 - core index']
  #allocation1 [shape = 'u32[144,128]{1,0:T(1,128)}', space=vmem, size = 0x12000, scoped, tag = 'internal scratch']
  #allocation2 [shape = 'f32[4,1]{1,0:T(4,128)}', space=vmem, size = 0x800, scoped, tag = 'scratch operand']
  #allocation3 [shape = 'f32[4,1]{1,0:T(4,128)}', space=vmem, size = 0x800, scoped, tag = 'scratch operand']
  #allocation4 [shape = 'f32[4,1]{1,0:T(4,128)}', space=vmem, size = 0x800, scoped, tag = 'scratch operand']
  #allocation5 [shape = 'f32[4,1]{1,0:T(4,128)}', space=vmem, size = 0x800, scoped, tag = 'scratch operand']
  %s0 = inlined_call_operand.vmem [shape: f32[2,4,256], index: 0, kind: input, shape index: {}]
  %s1 = inlined_call_operand.vmem [shape: s8[2,1,256], index: 1, kind: input, shape index: {}]
  %s2 = inlined_call_operand.hbm [shape: f32[1], index: 2, kind: output, shape index: {}]
  %s3 = sld [smem:[#allocation0]]
  $region49: #{boundary_dou_loss.1} parent=0
    _
  %s5 = ssub.s32 1, %s3
  %s6 = scalar_select 0, %s5, %s3
  $region1: #{boundary_dou_loss.1} parent=0
    #allocation6 [shape = 'u8[512]{0}', space=smem, size = 0x200, scoped, tag = 'output window, operand 0, single buffered']
    #allocation7 [shape = 's32[2]{0}', space=sflag, size = 0x8, scoped, tag = 'scoped memory for boundary_dou_loss.1']
    %7 = vsyncpa [#allocation7], 0
    loop: start=0, step=1, limit=4
    $region2: #{boundary_dou_loss.1} parent=1 // loop_pre_header
      _
    $region3: #{boundary_dou_loss.1} parent=1 // loop_header
      %s9 = sphi 0, %s13
      %p10 = scmp.ge.s32.totalorder %s9, 4
      %s19 = sphi 0, %s21
      %s22 = sphi 0, %s19
      %s23 = sphi 0, %s22
      %s39 = sphi 0, %s23
      %s45 = sphi 0, %s47
      %s48 = sphi 0, %s45
      %s49 = sphi 0, %s48
      %s65 = sphi 0, %s49
      %s69 = sphi 0, %s69
      %s71 = sphi 0, %s69
      %s72 = sphi 0, %s71
      %s86 = sphi 0, %s72
    $region4: #{boundary_dou_loss.1} parent=1 // loop_header_branch
      %12 = sbr.rel (%p10) target = $region8
    $region5: #{boundary_dou_loss.1} parent=1 // loop_body
      %s14 = ssub.s32 %s9, 1
      %s15 = ssub.s32 %s9, 2
      %s16 = sadd.s32 %s9, 1
      %s17 = ssub.s32 %s9, %s16
      %p18 = scmp.eq.s32.totalorder %s17, 0
      %s20 = sadd.s32 %s19, 1
      %s21 = scalar_select %p18, %s19, %s20
      %p24 = pneg %p18
      %p25 = scmp.eq.s32.totalorder %s9, 1
      %p26 = por %p24, %p25
      %p27 = scmp.ne.s32.totalorder %s19, %s22
      %p28 = scmp.eq.s32.totalorder %s9, 0
      %p29 = por %p27, %p28
      %p30 = scmp.ne.s32.totalorder %s19, %s22
      %p31 = scmp.eq.s32.totalorder %s14, 1
      %p32 = por %p30, %p31
      %p33 = scmp.ne.s32.totalorder %s22, %s23
      %p34 = scmp.eq.s32.totalorder %s14, 0
      %p35 = por %p33, %p34
      %p36 = scmp.ne.s32.totalorder %s22, %s23
      %p37 = scmp.eq.s32.totalorder %s15, 1
      %p38 = por %p36, %p37
      %p40 = scmp.ne.s32.totalorder %s23, %s39
      %p41 = scmp.eq.s32.totalorder %s15, 0
      %p42 = por %p40, %p41
      %s43 = ssub.s32 %s9, %s16
      %p44 = scmp.eq.s32.totalorder %s43, 0
      %s46 = sadd.s32 %s45, 1
      %s47 = scalar_select %p44, %s45, %s46
      %p50 = pneg %p44
      %p51 = scmp.eq.s32.totalorder %s9, 1
      %p52 = por %p50, %p51
      %p53 = scmp.ne.s32.totalorder %s45, %s48
      %p54 = scmp.eq.s32.totalorder %s9, 0
      %p55 = por %p53, %p54
      %p56 = scmp.ne.s32.totalorder %s45, %s48
      %p57 = scmp.eq.s32.totalorder %s14, 1
      %p58 = por %p56, %p57
      %p59 = scmp.ne.s32.totalorder %s48, %s49
      %p60 = scmp.eq.s32.totalorder %s14, 0
      %p61 = por %p59, %p60
      %p62 = scmp.ne.s32.totalorder %s48, %s49
      %p63 = scmp.eq.s32.totalorder %s15, 1
      %p64 = por %p62, %p63
      %p66 = scmp.ne.s32.totalorder %s49, %s65
      %p67 = scmp.eq.s32.totalorder %s15, 0
      %p68 = por %p66, %p67
      %s70 = sadd.s32 %s69, 1
      %p73 = scmp.eq.s32.totalorder %s9, 1
      %p74 = scmp.ne.s32.totalorder %s69, %s71
      %p75 = scmp.eq.s32.totalorder %s9, 0
      %p76 = por %p74, %p75
      %p77 = scmp.ne.s32.totalorder %s69, %s71
      %p78 = scmp.eq.s32.totalorder %s14, 1
      %p79 = por %p77, %p78
      %p80 = scmp.ne.s32.totalorder %s71, %s72
      %p81 = scmp.eq.s32.totalorder %s14, 0
      %p82 = por %p80, %p81
      %p83 = scmp.ne.s32.totalorder %s71, %s72
      %p84 = scmp.eq.s32.totalorder %s15, 1
      %p85 = por %p83, %p84
      %p87 = scmp.ne.s32.totalorder %s72, %s86
      %p88 = scmp.eq.s32.totalorder %s15, 0
      %p89 = por %p87, %p88
      %p90 = scmp.le.s32.totalorder 1, %s9
      %p91 = scmp.lt.s32.totalorder %s9, 3
      %p92 = pnand %p90, %p91
      %p93 = pneg %p92
      // Predicated region
      $region9: #{boundary_dou_loss.1} parent=5 // pred_check
        _
      $region10: #{boundary_dou_loss.1} parent=5 // pred_check_branch
        %95 = sbr.rel (%p92) target = $region12
      $region11: #{boundary_dou_loss.1} parent=5 // pred_region
        %s96 = ssub.s32 %s9, 1
      $region12: #{boundary_dou_loss.1} parent=5 // pred_fallthru
        _
      %p97 = scmp.lt.s32.totalorder %s9, 2
      // Predicated region
      $region13: #{boundary_dou_loss.1} parent=5 // pred_check
        %p98 = pneg %p97
      $region14: #{boundary_dou_loss.1} parent=5 // pred_check_branch
        %100 = sbr.rel (%p98) target = $region16
      $region15: #{boundary_dou_loss.1} parent=5 // pred_region
        // Predicated region
        $region17: #{boundary_dou_loss.1} parent=15 // pred_check
          %p101 = pneg %p29
        $region18: #{boundary_dou_loss.1} parent=15 // pred_check_branch
          %103 = sbr.rel (%p101) target = $region20
        $region19: #{boundary_dou_loss.1} parent=15 // pred_region
          %p104 = scmp.lt.s32.totalorder %s9, 1
          %s105 = scalar_select %p104, %s9, 1
          %s106 = smul.addr %s105, 2
          %s107 = smul.addr %s106, 4
          %s108 = scalar_lea.vmem %s0, %s107
        $region20: #{boundary_dou_loss.1} parent=15 // pred_fallthru
          _
        // Predicated region
        $region21: #{boundary_dou_loss.1} parent=15 // pred_check
          %p109 = pneg %p55
        $region22: #{boundary_dou_loss.1} parent=15 // pred_check_branch
          %111 = sbr.rel (%p109) target = $region24
        $region23: #{boundary_dou_loss.1} parent=15 // pred_region
          %p112 = scmp.lt.s32.totalorder %s9, 1
          %s113 = scalar_select %p112, %s9, 1
          %s114 = smul.addr %s113, 2
          %s115 = scalar_lea.vmem %s1, %s114
        $region24: #{boundary_dou_loss.1} parent=15 // pred_fallthru
          _
      $region16: #{boundary_dou_loss.1} parent=5 // pred_fallthru
        _
      %p116 = scmp.le.s32.totalorder 1, %s9
      %p117 = scmp.lt.s32.totalorder %s9, 3
      %p118 = pnand %p116, %p117
      %p119 = pneg %p118
      // Predicated region
      $region25: #{boundary_dou_loss.1} parent=5 // pred_check
        _
      $region26: #{boundary_dou_loss.1} parent=5 // pred_check_branch
        %121 = sbr.rel (%p118) target = $region28
      $region27: #{boundary_dou_loss.1} parent=5 // pred_region
        %s122 = ssub.s32 %s9, 1
        %p123 = scmp.lt.s32.totalorder %s14, 1
        %s124 = scalar_select %p123, %s14, 1
        %s125 = smul.addr %s124, 2
        %s126 = smul.addr %s125, 4
        %s127 = scalar_lea.vmem %s0, %s126
        %p128 = pneg %p35
        %p129 = pneg %p32
        %p130 = scmp.lt.s32.totalorder %s14, 1
        %s131 = scalar_select %p130, %s14, 1
        %s132 = smul.addr %s131, 2
        %s133 = scalar_lea.vmem %s1, %s132
        %p134 = pneg %p61
        %p135 = pneg %p58
        %p136 = pneg %p82
        %p137 = pneg %p79
        %p138 = scmp.lt.s32.totalorder %s14, 1
        %s139 = scalar_select %p138, %s14, 1
        %s140 = smul.addr %s139, 2
        %s141 = smul.addr %s140, 4
        %s142 = scalar_lea.vmem %s0, %s141
        %p143 = scmp.lt.s32.totalorder %s14, 1
        %s144 = scalar_select %p143, %s14, 1
        %s145 = smul.addr %s144, 2
        %s146 = scalar_lea.vmem %s1, %s145
        %p147 = scmp.eq.s32.totalorder %s14, 0
        // Predicated region
        $region29: #{boundary_dou_loss.1} parent=27 // pred_check
          %p148 = pneg %p147
        $region30: #{boundary_dou_loss.1} parent=27 // pred_check_branch
          %150 = sbr.rel (%p148) target = $region32
        $region31: #{boundary_dou_loss.1} parent=27 // pred_region
          %vm151 = vcmask 3072
          %152 = vst.msk [vmem:[#allocation2] sm:$0xf] %vm151, 0.0
          %153 = vst.msk [vmem:[#allocation3] sm:$0xf] %vm151, 0.0
          %154 = vst.msk [vmem:[#allocation4] sm:$0xf] %vm151, 0.0
          %155 = vst.msk [vmem:[#allocation5] sm:$0xf] %vm151, 0.0
        $region32: #{boundary_dou_loss.1} parent=27 // pred_fallthru
          _
        %v156 = vld [vmem:[%s142] sm:$0xff]
        %v157 = vld [vmem:[%s146] sm:$0x3]
        %v158 = vunpack.c.0.s8 %v157
        %v160 = vcombine.high %v156, %v156
        %vm162 = vcmask 1043456
        %v163 = vsel %vm162, %v156, -inf
        %v164 = vrot.slane %v163, 4
        %v165 = vmax.f32 %v163, %v164
        %v166 = vrot.slane %v165, 2
        %v167 = vmax.f32 %v165, %v166
        %v168 = vrot.slane %v167, 1
        %v169 = vmax.f32 %v167, %v168
        %v170 = vsel %vm162, %v160, -inf
        %v171 = vrot.slane %v170, 4
        %v172 = vmax.f32 %v170, %v171
        %v173 = vrot.slane %v172, 2
        %v174 = vmax.f32 %v172, %v173
        %v175 = vrot.slane %v174, 1
        %v176 = vmax.f32 %v174, %v175
        %v179 = vcombine.low %v169, %v176
        %v181 = vsub.f32 %v156, %v179
        %v182 = vmul.f32 %v181, 1.442695
        %v183 = vpow.pop %v182
        %v185 = vcombine.high %v183, %v183
        %v187 = vsel %vm162, %v183, 0.0
        %v188 = vrot.slane %v187, 4
        %v189 = vadd.f32 %v187, %v188
        %v190 = vrot.slane %v189, 2
        %v191 = vadd.f32 %v189, %v190
        %v192 = vrot.slane %v191, 1
        %v193 = vadd.f32 %v191, %v192
        %v194 = vsel %vm162, %v185, 0.0
        %v195 = vrot.slane %v194, 4
        %v196 = vadd.f32 %v194, %v195
        %v197 = vrot.slane %v196, 2
        %v198 = vadd.f32 %v196, %v197
        %v199 = vrot.slane %v198, 1
        %v200 = vadd.f32 %v198, %v199
        %v201 = vrcp.pop %v193
        %v202 = vmul.f32 1.0, %v201
        %v203 = vrcp.pop %v200
        %v204 = vmul.f32 1.0, %v203
        %v207 = vcombine.low %v202, %v204
        %v209 = vmul.f32 %v183, %v207
        %v210 = vlaneseq
        %v211 = vshrl.u32 %v210, 7
        %v212 = vlaneseq
        %v213 = vshrl.u32 %v212, 7
        %v214 = vsub.s32 0, %v213
        %v215 = vrot.slane %v158, %v214
        %v216 = vlaneseq
        %v217 = vshrl.u32 %v216, 7
        %v218 = vsub.s32 4, %v217
        %v219 = vrot.slane %v158, %v218
        %v220 = vlaneseq
        %v221 = vshrl.u32 %v220, 7
        %v222 = vsub.s32 0, %v221
        %v223 = vrot.slane %v215, %v222
        %v224 = vlaneseq
        %v225 = vshrl.u32 %v224, 7
        %v226 = vsub.s32 0, %v225
        %v227 = vrot.slane %v219, %v226
        %vm228 = vcmp.eq.s32.totalorder %v223, %v211
        %vm229 = vcmp.eq.s32.totalorder %v227, %v211
        %v230 = vsel %vm228, 1, 0
        %v231 = vsel %vm229, 1, 0
        %v232 = vcvt.s32.f32 %v230
        %v233 = vcvt.s32.f32 %v231
        %v234 = vlaneseq
        %v235 = vand.u32 %v234, 127
        %v236 = vadd.s32 %v235, 128
        %v237 = vand.u32 %v235, 15
        %v238 = vand.u32 %v236, 15
        %vm239 = vcmp.gt.s32.totalorder %v237, 0
        %vm240 = vcmp.gt.s32.totalorder %v238, 0
        %vm241 = vcmp.lt.s32.totalorder %v237, 15
        %vm242 = vcmp.lt.s32.totalorder %v238, 15
        %vm243 = vcmp.ge.s32.totalorder %v235, 16
        %vm244 = vcmp.ge.s32.totalorder %v236, 16
        %vm245 = vcmp.lt.s32.totalorder %v235, 240
        %vm246 = vcmp.lt.s32.totalorder %v236, 240
        %247 = vrot.lane.b32.xlu0 %v232, 1
        %v248 = vpop.permute.xlu0 %247
        %249 = vrot.lane.b32.xlu0 %v233, 1
        %v250 = vpop.permute.xlu0 %249
        %vm251 = vcmp.lt.s32.totalorder %v235, 1
        %v252 = vsel %vm251, %v248, %v250
        %v253 = vsel %vm251, %v250, %v248
        %v254 = vsel %vm239, 1, 0
        %v255 = vsel %vm240, 1, 0
        %vm256 = vcmp.eq.s32.totalorder %v254, 1
        %vm257 = vcmp.eq.s32.totalorder %v255, 1
        %v258 = vsel %vm256, %v253, 0.0
        %v259 = vsel %vm257, %v252, 0.0
        %v260 = vmul.f32 %v232, %v258
        %v261 = vmul.f32 %v233, %v259
        %262 = vrot.lane.b32.xlu0 %v232, 127
        %v263 = vpop.permute.xlu0 %262
        %264 = vrot.lane.b32.xlu0 %v233, 127
        %v265 = vpop.permute.xlu0 %264
        %vm266 = vcmp.lt.s32.totalorder %v235, 127
        %v267 = vsel %vm266, %v263, %v265
        %v268 = vsel %vm266, %v265, %v263
        %v269 = vsel %vm241, 1, 0
        %v270 = vsel %vm242, 1, 0
        %vm271 = vcmp.eq.s32.totalorder %v269, 1
        %vm272 = vcmp.eq.s32.totalorder %v270, 1
        %v273 = vsel %vm271, %v267, 0.0
        %v274 = vsel %vm272, %v268, 0.0
        %v275 = vmul.f32 %v260, %v273
        %v276 = vmul.f32 %v261, %v274
        %277 = vrot.lane.b32.xlu0 %v232, 16
        %v278 = vpop.permute.xlu0 %277
        %279 = vrot.lane.b32.xlu0 %v233, 16
        %v280 = vpop.permute.xlu0 %279
        %vm281 = vcmp.lt.s32.totalorder %v235, 16
        %v282 = vsel %vm281, %v278, %v280
        %v283 = vsel %vm281, %v280, %v278
        %v284 = vsel %vm243, 1, 0
        %v285 = vsel %vm244, 1, 0
        %vm286 = vcmp.eq.s32.totalorder %v284, 1
        %vm287 = vcmp.eq.s32.totalorder %v285, 1
        %v288 = vsel %vm286, %v283, 0.0
        %v289 = vsel %vm287, %v282, 0.0
        %v290 = vmul.f32 %v275, %v288
        %v291 = vmul.f32 %v276, %v289
        %292 = vrot.lane.b32.xlu0 %v232, 112
        %v293 = vpop.permute.xlu0 %292
        %294 = vrot.lane.b32.xlu0 %v233, 112
        %v295 = vpop.permute.xlu0 %294
        %vm296 = vcmp.lt.s32.totalorder %v235, 112
        %v297 = vsel %vm296, %v293, %v295
        %v298 = vsel %vm296, %v295, %v293
        %v299 = vsel %vm245, 1, 0
        %v300 = vsel %vm246, 1, 0
        %vm301 = vcmp.eq.s32.totalorder %v299, 1
        %vm302 = vcmp.eq.s32.totalorder %v300, 1
        %v303 = vsel %vm301, %v297, 0.0
        %v304 = vsel %vm302, %v298, 0.0
        %v305 = vmul.f32 %v290, %v303
        %v306 = vmul.f32 %v291, %v304
        %v307 = vld [vmem:[#allocation2] sm:$0xf]
        %v308 = vsel %vm162, %v232, 0.0
        %v309 = vsel %vm162, %v233, 0.0
        %v310 = vadd.f32 %v308, %v309
        %311 = vadd.xlane.f32.xlu0 %v310
        %v312 = vpop.xlane.xlu0 %311
        %v313 = vadd.f32 %v307, %v312
        %vm314 = vcmask 3072
        %315 = vst.msk [vmem:[#allocation2] sm:$0xf] %vm314, %v313
        %v316 = vld [vmem:[#allocation3] sm:$0xf]
        %v317 = vsel %vm162, %v305, 0.0
        %v318 = vsel %vm162, %v306, 0.0
        %v319 = vadd.f32 %v317, %v318
        %320 = vadd.xlane.f32.xlu0 %v319
        %v321 = vpop.xlane.xlu0 %320
        %v322 = vadd.f32 %v316, %v321
        %323 = vst.msk [vmem:[#allocation3] sm:$0xf] %vm314, %v322
        %v324 = vld [vmem:[#allocation4] sm:$0xf]
        %v327 = vcombine.low %v232, %v233
        %v329 = vmul.f32 %v209, %v327
        %v331 = vcombine.high %v329, %v329
        %v333 = vsel %vm162, %v329, 0.0
        %v334 = vsel %vm162, %v331, 0.0
        %v335 = vadd.f32 %v333, %v334
        %336 = vadd.xlane.f32.xlu0 %v335
        %v337 = vpop.xlane.xlu0 %336
        %v338 = vadd.f32 %v324, %v337
        %339 = vst.msk [vmem:[#allocation4] sm:$0xf] %vm314, %v338
        %v340 = vld [vmem:[#allocation5] sm:$0xf]
        %v341 = vmul.f32 %v209, %v209
        %v343 = vcombine.high %v341, %v341
        %v345 = vsel %vm162, %v341, 0.0
        %v346 = vsel %vm162, %v343, 0.0
        %v347 = vadd.f32 %v345, %v346
        %348 = vadd.xlane.f32.xlu0 %v347
        %v349 = vpop.xlane.xlu0 %348
        %v350 = vadd.f32 %v340, %v349
        %351 = vst.msk [vmem:[#allocation5] sm:$0xf] %vm314, %v350
        %p352 = scmp.eq.s32.totalorder %s14, 1
        // Predicated region
        $region33: #{boundary_dou_loss.1} parent=27 // pred_check
          %p353 = pneg %p352
        $region34: #{boundary_dou_loss.1} parent=27 // pred_check_branch
          %355 = sbr.rel (%p353) target = $region36
        $region35: #{boundary_dou_loss.1} parent=27 // pred_region
          %v356 = vld [vmem:[#allocation2] sm:$0xf]
          %v357 = vld [vmem:[#allocation3] sm:$0xf]
          %v358 = vsub.f32 %v356, %v357
          %v359 = vld [vmem:[#allocation4] sm:$0xf]
          %v360 = vld [vmem:[#allocation5] sm:$0xf]
          %v361 = vadd.f32 %v358, 1e-05
          %v362 = vadd.f32 %v356, 1e-05
          %v363 = vrcp.pop %v362
          %v364 = vmul.f32 %v361, %v363
          %v365 = vsub.f32 1.0, %v364
          %v366 = vmul.f32 %v365, 2.0
          %v367 = vsub.f32 %v366, 1.0
          %v368 = vmin.f32 %v367, 0.8
          %v369 = vadd.f32 %v360, %v356
          %v370 = vmul.f32 %v359, 2.0
          %v371 = vsub.f32 %v369, %v370
          %v372 = vadd.f32 %v371, 1e-05
          %v373 = vadd.f32 %v368, 1.0
          %v374 = vmul.f32 %v373, %v359
          %v375 = vsub.f32 %v369, %v374
          %v376 = vadd.f32 %v375, 1e-05
          %v377 = vrcp.pop %v376
          %v378 = vmul.f32 %v372, %v377
          %v379 = vsel %vm314, %v378, 0.0
          %380 = vadd.xlane.f32.xlu0 %v379
          %v381 = vpop.xlane.xlu0 %380
          %v382 = vrot.slane %v381, 4
          %v383 = vadd.f32 %v381, %v382
          %v384 = vrot.slane %v383, 2
          %v385 = vadd.f32 %v383, %v384
          %v386 = vrot.slane %v385, 1
          %v387 = vadd.f32 %v385, %v386
          %s388 = vtos %v387
          %v389 = vrcp.pop 4.0
          %s390 = vtos %v389
          %s391 = smul.f32 %s388, %s390
          %s392 = scalar_lea.smem [#allocation6], 0
          %393 = sst [smem:[%s392]] %s391
        $region36: #{boundary_dou_loss.1} parent=27 // pred_fallthru
          _
        // Predicated region
        $region37: #{boundary_dou_loss.1} parent=27 // pred_check
          %p394 = pneg %p79
        $region38: #{boundary_dou_loss.1} parent=27 // pred_check_branch
          %396 = sbr.rel (%p394) target = $region40
        $region39: #{boundary_dou_loss.1} parent=27 // pred_region
          %s398 = ssub.s32 16, 16
          %399 = vsyncadd [#allocation7], %s398
          %402 = dma.smem_to_hbm [#allocation6], 16, %s2, [#allocation7]
        $region40: #{boundary_dou_loss.1} parent=27 // pred_fallthru
          _
        // Predicated region
        $region41: #{boundary_dou_loss.1} parent=27 // pred_check
          %p403 = pneg %p79
        $region42: #{boundary_dou_loss.1} parent=27 // pred_check_branch
          %405 = sbr.rel (%p403) target = $region44
        $region43: #{boundary_dou_loss.1} parent=27 // pred_region
          %406 = dma.done [#allocation7], 16
        $region44: #{boundary_dou_loss.1} parent=27 // pred_fallthru
          _
        %407 = sfence
      $region28: #{boundary_dou_loss.1} parent=5 // pred_fallthru
        _
      %p408 = scmp.le.s32.totalorder 2, %s9
      // Predicated region
      $region45: #{boundary_dou_loss.1} parent=5 // pred_check
        %p409 = pneg %p408
      $region46: #{boundary_dou_loss.1} parent=5 // pred_check_branch
        %411 = sbr.rel (%p409) target = $region48
      $region47: #{boundary_dou_loss.1} parent=5 // pred_region
        %s412 = ssub.s32 %s9, 2
      $region48: #{boundary_dou_loss.1} parent=5 // pred_fallthru
        _
    $region6: #{boundary_dou_loss.1} parent=1 // loop_footer
      %s13 = sadd.s32 1, %s9
    $region7: #{boundary_dou_loss.1} parent=1 // loop_footer_branch
      %8 = sbr.rel target = $region3
    $region8: #{boundary_dou_loss.1} parent=1 // loop_exit
      _
    %413 = vsyncpa [#allocation7], 1
    %s414 = scalar_lea.sflag [#allocation7], 1
    %415 = vsyncpa %s414, 1

</llo_original>
